<compile_context>
chip_gen: v5e
topology: v5e:2x2
jax: 0.10.0
libtpu: 0.0.40
codegen_flags: <defaults>
</compile_context>

<pallas_src>
import functools
import math

import jax
import jax.numpy as jnp
from jax.experimental import pallas as pl
from jax.experimental.pallas import tpu as pltpu

_LANES = 128


def _bce_elementwise(p, t):
    # torch.nn.BCELoss(reduction='none'): -(t*log(p) + (1-t)*log(1-p)), log clamped at -100.
    log_p = jnp.maximum(jnp.log(p), jnp.float32(-100.0))
    log_1mp = jnp.maximum(jnp.log(1.0 - p), jnp.float32(-100.0))
    return -(t * log_p + (1.0 - t) * log_1mp)


def _weighted_loss_tile(p, t, loss_fn, weights):
    loss = loss_fn(p, t)
    # loss[targets == c] *= w   (class values are distinct, so a where-chain is equivalent)
    # TODO(synk): for large weight dicts, replace the compare+select chain with a small
    # SMEM/VMEM weight-table lookup keyed by integer-cast targets.
    for c, w in weights.items():
        loss = jnp.where(t == jnp.float32(float(c)),
                         loss * jnp.float32(float(w)), loss)
    return loss


def _kernel_none(out_ref, tgt_ref, res_ref, *, loss_fn, weights):
    p = out_ref[...].astype(jnp.float32)               # (TR, 128)
    t = tgt_ref[...].astype(jnp.float32)
    res_ref[...] = _weighted_loss_tile(p, t, loss_fn, weights)


def _kernel_partial(out_ref, tgt_ref, part_ref, *, loss_fn, weights, n_valid, block_rows):
    pid = pl.program_id(0)
    last = pl.num_programs(0) - 1

    p = out_ref[...].astype(jnp.float32)               # (TR, 128)
    t = tgt_ref[...].astype(jnp.float32)
    loss = _weighted_loss_tile(p, t, loss_fn, weights)

    # Interior tiles are fully valid: plain sublane reduce to a lane-dense partial row.
    @pl.when(pid != last)
    def _():
        part_ref[...] = jnp.sum(loss, axis=0, keepdims=True)

    # Only the last tile can contain padded elements / clipped-boundary garbage.
    @pl.when(pid == last)
    def _():
        row = jax.lax.broadcasted_iota(jnp.int32, loss.shape, 0) + pid * block_rows
        lane = jax.lax.broadcasted_iota(jnp.int32, loss.shape, 1)
        valid = (row * _LANES + lane) < n_valid
        part_ref[...] = jnp.sum(jnp.where(valid, loss, jnp.float32(0.0)),
                                axis=0, keepdims=True)


def class_weighted_loss(outputs, targets, weights, *, reduction='mean',
                        loss_fn=_bce_elementwise, block_rows=2048):
    """Pallas-backed equivalent of ClassWeightedLoss.forward (wrapped loss = loss_fn)."""
    if reduction not in ('none', 'mean', 'sum'):
        raise ValueError(f'Unknown reduction {reduction}')
    if outputs.shape != targets.shape:
        raise ValueError('Wrapped loss for ClassWeightedLoss should not use any reduction')

    orig_shape = targets.shape
    n = int(math.prod(orig_shape)) if orig_shape else 1

    if n == 0:
        if reduction == 'none':
            return jnp.zeros(orig_shape, jnp.float32)
        if reduction == 'sum':
            return jnp.float32(0.0)
        return jnp.float32(jnp.nan)                    # torch: mean of an empty tensor is nan

    # Lane-dense view; native dtypes are kept (upcast happens per-tile in the kernel).
    flat_p = outputs.reshape(-1)
    flat_t = targets.reshape(-1)

    rows = pl.cdiv(n, _LANES)
    n_slab = rows * _LANES
    padded = n_slab != n
    if padded:
        # Pad only the tail row (< 128 elems). p=0,t=0 gives exactly 0 BCE loss and is
        # masked out of the reduction regardless.
        flat_p = jnp.pad(flat_p, (0, n_slab - n))
        flat_t = jnp.pad(flat_t, (0, n_slab - n))
    p2 = flat_p.reshape(rows, _LANES)                  # layout-preserving reshape
    t2 = flat_t.reshape(rows, _LANES)

    tr = min(block_rows, rows)                         # block_rows is a multiple of 8;
    nblocks = pl.cdiv(rows, tr)                        # tr==rows uses the full dim (allowed)

    in_specs = [pl.BlockSpec((tr, _LANES), lambda i: (i, 0)),
                pl.BlockSpec((tr, _LANES), lambda i: (i, 0))]
    vmem_limit = 32 * 1024 * 1024                      # >> the ~6 MiB we actually use

    if reduction == 'none':
        kernel = functools.partial(_kernel_none, loss_fn=loss_fn, weights=dict(weights))
        res = pl.pallas_call(
            kernel,
            out_shape=jax.ShapeDtypeStruct((rows, _LANES), jnp.float32),
            grid=(nblocks,),
            in_specs=in_specs,
            out_specs=pl.BlockSpec((tr, _LANES), lambda i: (i, 0)),
            compiler_params=pltpu.CompilerParams(
                dimension_semantics=("parallel",),
                vmem_limit_bytes=vmem_limit),
        )(p2, t2)
        if padded:
            return res.reshape(-1)[:n].reshape(orig_shape)
        return res.reshape(orig_shape)

    # 'sum' / 'mean': per-block lane-dense partial sums on a parallel axis; tiny final
    # reduction happens in XLA (tree-sum, better f32 accuracy than a serial scalar acc).
    kernel = functools.partial(_kernel_partial, loss_fn=loss_fn, weights=dict(weights),
                               n_valid=n, block_rows=tr)
    partials = pl.pallas_call(
        kernel,
        out_shape=jax.ShapeDtypeStruct((nblocks, _LANES), jnp.float32),
        grid=(nblocks,),
        in_specs=in_specs,
        out_specs=pl.BlockSpec((1, _LANES), lambda i: (i, 0)),
        compiler_params=pltpu.CompilerParams(
            dimension_semantics=("parallel",),
            vmem_limit_bytes=vmem_limit),
    )(p2, t2)
    total = jnp.sum(partials, dtype=jnp.float32)
    if reduction == 'mean':
        return total / jnp.float32(n)
    return total


def _reference(outputs, targets, weights, reduction):
    loss = _bce_elementwise(outputs.astype(jnp.float32), targets.astype(jnp.float32))
    for c, w in weights.items():
        loss = jnp.where(targets == float(c), loss * float(w), loss)
    if reduction == 'none':
        return loss
    if reduction == 'sum':
        return jnp.sum(loss)
    return jnp.mean(loss)


if __name__ == "__main__":
    key = jax.random.PRNGKey(0)
    k_out, k_tgt = jax.random.split(key)

    ok = True
    # First shape exercises the clean (multiple-of-128) fast path; second exercises the
    # padded tail + last-block mask path.
    for shape in ((2, 4, 16), (2, 4, 15)):
        logits = jax.random.normal(k_out, shape, dtype=jnp.float32)
        outputs = jax.nn.sigmoid(logits)               # probabilities for BCELoss
        targets = jax.random.bernoulli(k_tgt, 0.5, shape).astype(jnp.float32)
        weights = {0.0: 0.25, 1.0: 2.5}                # per-class multipliers

        for reduction in ('mean', 'sum', 'none'):
            got = class_weighted_loss(outputs, targets, weights, reduction=reduction)
            got = jax.block_until_ready(got)
            want = _reference(outputs, targets, weights, reduction)
            if not jnp.allclose(got, want, atol=1e-5, rtol=1e-5):
                ok = False
                print(f"MISMATCH shape={shape} reduction={reduction}: got={got}, want={want}")

    if ok:
        print("KERNEL_OK")
</pallas_src>

<mosaic_0001>
module attributes {stable_mosaic.version = 11 : i64} {
  func.func @_kernel_partial(%arg0: i32, %arg1: memref<1x128xf32, #tpu.memory_space<vmem>>, %arg2: memref<1x128xf32, #tpu.memory_space<vmem>>, %arg3: memref<1x128xf32, #tpu.memory_space<vmem>>) attributes {dimension_semantics = [#tpu.dimension_semantics<parallel>], iteration_bounds = array<i64: 1>, scalar_prefetch = 0 : i64, scratch_operands = 0 : i64, tpu.core_type = #tpu.core_type<tc>, window_params = [{transform_indices = @transform_0, window_bounds = array<i64: 1, 128>}, {transform_indices = @transform_1, window_bounds = array<i64: 1, 128>}, {transform_indices = @transform_2, window_bounds = array<i64: 1, 128>}]} {
    %c0 = arith.constant 0 : index
    %c0_0 = arith.constant 0 : index
    %0 = vector.load %arg1[%c0, %c0_0] : memref<1x128xf32, #tpu.memory_space<vmem>>, vector<1x128xf32>
    %c0_1 = arith.constant 0 : index
    %c0_2 = arith.constant 0 : index
    %1 = vector.load %arg2[%c0_1, %c0_2] : memref<1x128xf32, #tpu.memory_space<vmem>>, vector<1x128xf32>
    %2 = math.log %0 : vector<1x128xf32>
    %cst = arith.constant -1.000000e+02 : f32
    %3 = vector.broadcast %cst : f32 to vector<1x128xf32>
    %4 = arith.maximumf %2, %3 : vector<1x128xf32>
    %cst_3 = arith.constant 1.000000e+00 : f32
    %5 = vector.broadcast %cst_3 : f32 to vector<1x128xf32>
    %6 = arith.subf %5, %0 : vector<1x128xf32>
    %7 = math.log %6 : vector<1x128xf32>
    %cst_4 = arith.constant -1.000000e+02 : f32
    %8 = vector.broadcast %cst_4 : f32 to vector<1x128xf32>
    %9 = arith.maximumf %7, %8 : vector<1x128xf32>
    %10 = arith.mulf %1, %4 : vector<1x128xf32>
    %cst_5 = arith.constant 1.000000e+00 : f32
    %11 = vector.broadcast %cst_5 : f32 to vector<1x128xf32>
    %12 = arith.subf %11, %1 : vector<1x128xf32>
    %13 = arith.mulf %12, %9 : vector<1x128xf32>
    %14 = arith.addf %10, %13 : vector<1x128xf32>
    %cst_6 = arith.constant 0.000000e+00 : f32
    %15 = vector.broadcast %cst_6 : f32 to vector<1x128xf32>
    %16 = arith.subf %15, %14 : vector<1x128xf32>
    %cst_7 = arith.constant 0.000000e+00 : f32
    %17 = vector.broadcast %cst_7 : f32 to vector<1x128xf32>
    %18 = arith.cmpf oeq, %1, %17 : vector<1x128xf32>
    %cst_8 = arith.constant 2.500000e-01 : f32
    %19 = vector.broadcast %cst_8 : f32 to vector<1x128xf32>
    %20 = arith.mulf %16, %19 : vector<1x128xf32>
    %21 = arith.select %18, %20, %16 : vector<1x128xi1>, vector<1x128xf32>
    %cst_9 = arith.constant 1.000000e+00 : f32
    %22 = vector.broadcast %cst_9 : f32 to vector<1x128xf32>
    %23 = arith.cmpf oeq, %1, %22 : vector<1x128xf32>
    %cst_10 = arith.constant 2.500000e+00 : f32
    %24 = vector.broadcast %cst_10 : f32 to vector<1x128xf32>
    %25 = arith.mulf %21, %24 : vector<1x128xf32>
    %26 = arith.select %23, %25, %21 : vector<1x128xi1>, vector<1x128xf32>
    %c0_i32 = arith.constant 0 : i32
    %27 = arith.cmpi ne, %arg0, %c0_i32 : i32
    %28 = arith.extui %27 : i1 to i32
    %c0_i32_11 = arith.constant 0 : i32
    %29 = arith.cmpi ne, %28, %c0_i32_11 : i32
    scf.if %29 {
      %cst_14 = arith.constant dense<0.000000e+00> : vector<128xf32>
      %33 = vector.multi_reduction <add>, %26, %cst_14 [0] : vector<1x128xf32> to vector<128xf32>
      %34 = vector.shape_cast %33 : vector<128xf32> to vector<1x128xf32>
      %c0_15 = arith.constant 0 : index
      %c0_16 = arith.constant 0 : index
      %35 = vector.load %arg3[%c0_15, %c0_16] : memref<1x128xf32, #tpu.memory_space<vmem>>, vector<1x128xf32>
      tpu.vector_store %arg3[%c0_15, %c0_16], %34 {strides = array<i32>} : memref<1x128xf32, #tpu.memory_space<vmem>>, vector<1x128xf32>,
    } else {
    }
    %c0_i32_12 = arith.constant 0 : i32
    %30 = arith.cmpi eq, %arg0, %c0_i32_12 : i32
    %31 = arith.extui %30 : i1 to i32
    %c0_i32_13 = arith.constant 0 : i32
    %32 = arith.cmpi ne, %31, %c0_i32_13 : i32
    scf.if %32 {
      %33 = tpu.iota {dimensions = array<i32: 0>} : vector<1x128xi32>
      %c1_i32 = arith.constant 1 : i32
      %34 = arith.muli %arg0, %c1_i32 : i32
      %35 = vector.broadcast %34 : i32 to vector<1x128xi32>
      %36 = arith.addi %33, %35 : vector<1x128xi32>
      %37 = tpu.iota {dimensions = array<i32: 1>} : vector<1x128xi32>
      %c128_i32 = arith.constant 128 : i32
      %38 = vector.broadcast %c128_i32 : i32 to vector<1x128xi32>
      %39 = arith.muli %36, %38 : vector<1x128xi32>
      %40 = arith.addi %39, %37 : vector<1x128xi32>
      %c128_i32_14 = arith.constant 128 : i32
      %41 = vector.broadcast %c128_i32_14 : i32 to vector<1x128xi32>
      %42 = arith.cmpi slt, %40, %41 : vector<1x128xi32>
      %cst_15 = arith.constant 0.000000e+00 : f32
      %43 = vector.broadcast %cst_15 : f32 to vector<1x128xf32>
      %44 = arith.select %42, %26, %43 : vector<1x128xi1>, vector<1x128xf32>
      %cst_16 = arith.constant dense<0.000000e+00> : vector<128xf32>
      %45 = vector.multi_reduction <add>, %44, %cst_16 [0] : vector<1x128xf32> to vector<128xf32>
      %46 = vector.shape_cast %45 : vector<128xf32> to vector<1x128xf32>
      %c0_17 = arith.constant 0 : index
      %c0_18 = arith.constant 0 : index
      %47 = vector.load %arg3[%c0_17, %c0_18] : memref<1x128xf32, #tpu.memory_space<vmem>>, vector<1x128xf32>
      tpu.vector_store %arg3[%c0_17, %c0_18], %46 {strides = array<i32>} : memref<1x128xf32, #tpu.memory_space<vmem>>, vector<1x128xf32>,
    } else {
    }
    return
  }
  func.func @transform_0(%arg0: i32) -> (i32, i32) {
    %c0_i32 = arith.constant 0 : i32
    %c0_i32_0 = arith.constant 0 : i32
    return %arg0, %c0_i32 : i32, i32
  }
  func.func @transform_1(%arg0: i32) -> (i32, i32) {
    %c0_i32 = arith.constant 0 : i32
    %c0_i32_0 = arith.constant 0 : i32
    return %arg0, %c0_i32 : i32, i32
  }
  func.func @transform_2(%arg0: i32) -> (i32, i32) {
    %c0_i32 = arith.constant 0 : i32
    %c0_i32_0 = arith.constant 0 : i32
    return %arg0, %c0_i32 : i32, i32
  }
}

</mosaic_0001>

<llo_original>
// kernel: tpu_custom_call.1
$region0: #{tpu_custom_call.1}
  #allocation0 [shape = 'u32[]', space=smem, size = 0x4, offset = 0x4, fixed_abs, tag = 'smem constant byte address 0x4 - core index']
  #allocation1 [shape = 'u32[72,128]{1,0:T(1,128)}', space=vmem, size = 0x9000, scoped, tag = 'internal scratch']
  %s0 = inlined_call_operand.hbm [shape: f32[1,128], index: 0, kind: input, shape index: {}]
  %s1 = inlined_call_operand.hbm [shape: f32[1,128], index: 1, kind: input, shape index: {}]
  %s2 = inlined_call_operand.hbm [shape: f32[1,128], index: 2, kind: output, shape index: {}]
  %s3 = sld [smem:[#allocation0]]
  $region34: #{tpu_custom_call.1} parent=0
    _
  %s5 = ssub.s32 1, %s3
  %s6 = scalar_select 0, %s5, %s3
  $region1: #{tpu_custom_call.1} parent=0
    #allocation2 [shape = 'u8[512]{0}', space=vmem, size = 0x400, scoped, tag = 'input window, operand 0, single buffered']
    #allocation3 [shape = 's32[1]{0}', space=sflag, size = 0x4, scoped, tag = 'scoped memory for tpu_custom_call.1']
    #allocation4 [shape = 's32[1]{0}', space=sflag, size = 0x4, scoped, tag = 'scoped memory for tpu_custom_call.1']
    #allocation5 [shape = 'u8[512]{0}', space=vmem, size = 0x400, scoped, tag = 'input window, operand 1, single buffered']
    #allocation6 [shape = 's32[1]{0}', space=sflag, size = 0x4, scoped, tag = 'scoped memory for tpu_custom_call.1']
    #allocation7 [shape = 'u8[512]{0}', space=vmem, size = 0x400, scoped, tag = 'output window, operand 0, single buffered']
    %7 = vsyncpa [#allocation3], 0
    %8 = vsyncpa [#allocation6], 0
    %9 = vsyncpa [#allocation4], 0
    // Predicated region
    $region2: #{tpu_custom_call.1} parent=1 // pred_check
      _
    $region3: #{tpu_custom_call.1} parent=1 // pred_check_branch
      %11 = sbr.rel (0) target = $region5
    $region4: #{tpu_custom_call.1} parent=1 // pred_region
      %13 = vsyncadd [#allocation3], 0
      %s15 = sshll.u32 %s0, 4
      %s16 = int_to_ptr.hbm [resolvable:$true] %s15
      %s17 = sshll.u32 [#allocation2], 4
      %s18 = int_to_ptr.vmem [resolvable:$true] %s17
      %20 = dma.hbm_to_vmem [thread:$0]  %s16, 16, %s18, [#allocation3]
    $region5: #{tpu_custom_call.1} parent=1 // pred_fallthru
      _
    // Predicated region
    $region6: #{tpu_custom_call.1} parent=1 // pred_check
      _
    $region7: #{tpu_custom_call.1} parent=1 // pred_check_branch
      %22 = sbr.rel (0) target = $region9
    $region8: #{tpu_custom_call.1} parent=1 // pred_region
      %24 = vsyncadd [#allocation6], 0
      %s26 = sshll.u32 %s1, 4
      %s27 = int_to_ptr.hbm [resolvable:$true] %s26
      %s28 = sshll.u32 [#allocation5], 4
      %s29 = int_to_ptr.vmem [resolvable:$true] %s28
      %31 = dma.hbm_to_vmem [thread:$0]  %s27, 16, %s29, [#allocation6]
    $region9: #{tpu_custom_call.1} parent=1 // pred_fallthru
      _
    // Predicated region
    $region10: #{tpu_custom_call.1} parent=1 // pred_check
      _
    $region11: #{tpu_custom_call.1} parent=1 // pred_check_branch
      %33 = sbr.rel (0) target = $region13
    $region12: #{tpu_custom_call.1} parent=1 // pred_region
      %35 = dma.done [#allocation3], 16
    $region13: #{tpu_custom_call.1} parent=1 // pred_fallthru
      _
    // Predicated region
    $region14: #{tpu_custom_call.1} parent=1 // pred_check
      _
    $region15: #{tpu_custom_call.1} parent=1 // pred_check_branch
      %37 = sbr.rel (0) target = $region17
    $region16: #{tpu_custom_call.1} parent=1 // pred_region
      %39 = dma.done [#allocation6], 16
    $region17: #{tpu_custom_call.1} parent=1 // pred_fallthru
      _
    %v40 = vld [vmem:[#allocation2] sm:$0x1]
    %v41 = vld [vmem:[#allocation5] sm:$0x1]
    %v42 = vlog2.pop %v40
    %v43 = vmul.f32 %v42, 0.6931472
    %v44 = vmax.f32 %v43, -100.0
    %v45 = vsub.f32 1.0, %v40
    %v46 = vlog2.pop %v45
    %v47 = vmul.f32 %v46, 0.6931472
    %v48 = vmax.f32 %v47, -100.0
    %v49 = vmul.f32 %v41, %v44
    %v50 = vsub.f32 1.0, %v41
    %v51 = vmul.f32 %v50, %v48
    %v52 = vadd.f32 %v49, %v51
    %v53 = vsub.f32 0.0, %v52
    %vm54 = vcmp.eq.f32.partialorder %v41, 0.0
    %v55 = vmul.f32 %v53, 0.25
    %v56 = vsel %vm54, %v55, %v53
    %vm57 = vcmp.eq.f32.partialorder %v41, 1.0
    %v58 = vmul.f32 %v56, 2.5
    %v59 = vsel %vm57, %v58, %v56
    %p60 = scmp.ne.s32.totalorder 0, 0
    // Predicated region
    $region18: #{tpu_custom_call.1} parent=1 // pred_check
      %p61 = pneg %p60
    $region19: #{tpu_custom_call.1} parent=1 // pred_check_branch
      %63 = sbr.rel (%p61) target = $region21
    $region20: #{tpu_custom_call.1} parent=1 // pred_region
      %v64 = vadd.f32 %v59, 0.0
      %65 = vst [vmem:[#allocation7] sm:$0x1] %v64
    $region21: #{tpu_custom_call.1} parent=1 // pred_fallthru
      _
    %p66 = scmp.eq.s32.totalorder 0, 0
    // Predicated region
    $region22: #{tpu_custom_call.1} parent=1 // pred_check
      %p67 = pneg %p66
    $region23: #{tpu_custom_call.1} parent=1 // pred_check_branch
      %69 = sbr.rel (%p67) target = $region25
    $region24: #{tpu_custom_call.1} parent=1 // pred_region
      %v70 = vlaneseq
      %v71 = vshrl.u32 %v70, 7
      %v72 = vstv 0
      %v73 = vadd.s32 %v71, %v72
      %v74 = vlaneseq
      %v75 = vand.u32 %v74, 127
      %v76 = vmul.u32 %v73, 128
      %v77 = vadd.s32 %v76, %v75
      %vm78 = vcmp.lt.s32.totalorder %v77, 128
      %v79 = vsel %vm78, %v59, 0.0
      %v80 = vadd.f32 %v79, 0.0
      %81 = vst [vmem:[#allocation7] sm:$0x1] %v80
    $region25: #{tpu_custom_call.1} parent=1 // pred_fallthru
      _
    // Predicated region
    $region26: #{tpu_custom_call.1} parent=1 // pred_check
      _
    $region27: #{tpu_custom_call.1} parent=1 // pred_check_branch
      %83 = sbr.rel (0) target = $region29
    $region28: #{tpu_custom_call.1} parent=1 // pred_region
      %85 = vsyncadd [#allocation4], 0
      %s87 = sshll.u32 [#allocation7], 4
      %s88 = int_to_ptr.vmem [resolvable:$true] %s87
      %s89 = sshll.u32 %s2, 4
      %s90 = int_to_ptr.hbm [resolvable:$true] %s89
      %92 = dma.vmem_to_hbm [thread:$0]  %s88, 16, %s90, [#allocation4]
    $region29: #{tpu_custom_call.1} parent=1 // pred_fallthru
      _
    // Predicated region
    $region30: #{tpu_custom_call.1} parent=1 // pred_check
      _
    $region31: #{tpu_custom_call.1} parent=1 // pred_check_branch
      %94 = sbr.rel (0) target = $region33
    $region32: #{tpu_custom_call.1} parent=1 // pred_region
      %96 = dma.done [#allocation4], 16
    $region33: #{tpu_custom_call.1} parent=1 // pred_fallthru
      _
    %97 = vsyncpa [#allocation3], 1
    %98 = vsyncpa [#allocation6], 1
    %99 = vsyncpa [#allocation4], 1

</llo_original>
